<compile_context>
chip_gen: v7x
topology: tpu7x:2x2x1
jax: 0.10.0
libtpu: 0.0.40
codegen_flags: <defaults>
</compile_context>

<pallas_src>
import functools

import jax
import jax.numpy as jnp
import numpy as np
from jax.experimental import pallas as pl
from jax.experimental.pallas import tpu as pltpu

_VMEM_LIMIT = 48 * 1024 * 1024  # within v7x's 64 MiB physical, above v5e's 16 MiB default


def _round_up(x, m):
    return (x + m - 1) // m * m


# ----------------------------------------------------------------------------
# Generic tiled matmul + bias:  (M, K) @ (K, N) + (N,)  ->  (M, N)
# bf16 MXU operands, f32 VMEM accumulator, pl.when init/finalize.
# ----------------------------------------------------------------------------
def _matmul_bias_kernel(x_ref, w_ref, b_ref, o_ref, acc_ref):
    k = pl.program_id(2)

    @pl.when(k == 0)
    def _():
        acc_ref[...] = jnp.zeros_like(acc_ref)

    acc_ref[...] += jnp.dot(x_ref[...], w_ref[...],
                            preferred_element_type=jnp.float32)

    @pl.when(k == pl.num_programs(2) - 1)
    def _():
        o_ref[...] = (acc_ref[...] + b_ref[...]).astype(o_ref.dtype)


def matmul_bias(x, w, b, *, tm=128, tn=256, tk=512):
    """x: (M, K) f32, w: (K, N) f32, b: (N,) f32 -> (M, N) f32."""
    M, K = x.shape
    K2, N = w.shape
    assert K == K2
    tm = min(tm, _round_up(M, 8))
    tn = min(tn, _round_up(N, 128))
    tk = min(tk, _round_up(K, 128))
    Mp, Kp, Np = _round_up(M, tm), _round_up(K, tk), _round_up(N, tn)

    xp = jnp.zeros((Mp, Kp), jnp.bfloat16).at[:M, :K].set(x.astype(jnp.bfloat16))
    wp = jnp.zeros((Kp, Np), jnp.bfloat16).at[:K, :N].set(w.astype(jnp.bfloat16))
    bp = jnp.zeros((1, Np), jnp.float32).at[:, :N].set(
        b.astype(jnp.float32).reshape(1, N))

    out = pl.pallas_call(
        _matmul_bias_kernel,
        out_shape=jax.ShapeDtypeStruct((Mp, Np), jnp.float32),
        grid_spec=pltpu.PrefetchScalarGridSpec(
            num_scalar_prefetch=0,
            grid=(Mp // tm, Np // tn, Kp // tk),
            in_specs=[
                pl.BlockSpec((tm, tk), lambda i, j, k: (i, k)),
                pl.BlockSpec((tk, tn), lambda i, j, k: (k, j)),
                pl.BlockSpec((1, tn), lambda i, j, k: (0, j)),
            ],
            out_specs=pl.BlockSpec((tm, tn), lambda i, j, k: (i, j)),
            scratch_shapes=[pltpu.VMEM((tm, tn), jnp.float32)],
        ),
        compiler_params=pltpu.CompilerParams(
            dimension_semantics=("parallel", "parallel", "arbitrary"),
            vmem_limit_bytes=_VMEM_LIMIT),
    )(xp, wp, bp)
    return out[:M, :N]


# ----------------------------------------------------------------------------
# Weight repacking helpers: PyTorch (4H, K) gate-stacked weights are
# transposed and each gate block [i,f,g,o] is placed in its own Hp-wide
# (128-aligned) slot so in-kernel gate slices are lane-tile aligned.
# Padded rows/cols/bias are zero -> padded (h, c) lanes stay exactly zero.
# ----------------------------------------------------------------------------
def _prep_rec_weight(w, hidden, hp):
    """w: (4H, H) -> (Hp, 4Hp) bf16, transposed + gate-slot padded."""
    k = w.shape[1]
    wt = jnp.transpose(w)                              # (H, 4H)
    out = jnp.zeros((hp, 4 * hp), jnp.float32)
    for g in range(4):
        out = out.at[:k, g * hp:g * hp + hidden].set(
            wt[:, g * hidden:(g + 1) * hidden])
    return out.astype(jnp.bfloat16)


def _prep_in_weight(w, hidden, hp):
    """w_ih of layer 0: (4H, E) -> (E, 4Hp) f32 (K padded inside matmul)."""
    wt = jnp.transpose(w)                              # (E, 4H)
    e = wt.shape[0]
    out = jnp.zeros((e, 4 * hp), jnp.float32)
    for g in range(4):
        out = out.at[:, g * hp:g * hp + hidden].set(
            wt[:, g * hidden:(g + 1) * hidden])
    return out


def _prep_gate_bias(b, hidden, hp):
    """(4H,) -> (4Hp,) with each gate bias in its 128-aligned slot."""
    out = jnp.zeros((4 * hp,), jnp.float32)
    for g in range(4):
        out = out.at[g * hp:g * hp + hidden].set(b[g * hidden:(g + 1) * hidden])
    return out


# ----------------------------------------------------------------------------
# Fused multi-layer LSTM kernel.
#   grid = (batch_blocks [parallel], time_chunks [arbitrary])
#   xg_ref:   (Tc, Bb, 4Hp) f32  precomputed layer-0 gate pre-activations
#   wih_ref:  (L-1, Hp, 4Hp) bf16  input weights of layers >= 1
#   whh_ref:  (L,   Hp, 4Hp) bf16  recurrent weights of all layers
#   b_ref:    (L-1, 1, 4Hp) f32   fused biases of layers >= 1
#   hout_ref: (Tc, Bb, Hp)  f32   last-layer hidden states
#   h_sc/c_sc: VMEM (L, Bb, Hp) f32 recurrent state, persists across chunks
# ----------------------------------------------------------------------------
def _fused_lstm_kernel(xg_ref, wih_ref, whh_ref, b_ref, hout_ref, h_sc, c_sc,
                       *, num_layers, hp, t_chunk):
    t_blk = pl.program_id(1)

    @pl.when(t_blk == 0)
    def _():
        h_sc[...] = jnp.zeros_like(h_sc)
        c_sc[...] = jnp.zeros_like(c_sc)

    def _cell(gates, c_prev):
        i = jax.nn.sigmoid(gates[:, 0 * hp:1 * hp])
        f = jax.nn.sigmoid(gates[:, 1 * hp:2 * hp])
        g = jnp.tanh(gates[:, 2 * hp:3 * hp])
        o = jax.nn.sigmoid(gates[:, 3 * hp:4 * hp])
        c_new = f * c_prev + i * g
        h_new = o * jnp.tanh(c_new)
        return h_new, c_new

    # Whole time chunk fully unrolled with static indices (t_chunk <= 32);
    # equivalent to lax.fori_loop(..., unroll=True) but with static addressing.
    for t in range(t_chunk):
        # Layer 0: input projection was hoisted -> only the small recurrent matmul.
        gates = xg_ref[t] + jnp.dot(h_sc[0].astype(jnp.bfloat16), whh_ref[0],
                                    preferred_element_type=jnp.float32)
        h_new, c_new = _cell(gates, c_sc[0])
        h_sc[0] = h_new
        c_sc[0] = c_new
        h_below = h_new
        # Stacked layers 1..L-1: everything stays in VMEM / vregs.
        for l in range(1, num_layers):
            gates = (jnp.dot(h_below.astype(jnp.bfloat16), wih_ref[l - 1],
                             preferred_element_type=jnp.float32)
                     + jnp.dot(h_sc[l].astype(jnp.bfloat16), whh_ref[l],
                               preferred_element_type=jnp.float32)
                     + b_ref[l - 1])
            h_new, c_new = _cell(gates, c_sc[l])
            h_sc[l] = h_new
            c_sc[l] = c_new
            h_below = h_new
        hout_ref[t] = h_below


def decoder_lstm(x_tbe, lstm_params):
    """Fused stacked LSTM. x_tbe: (T, B, E) f32 time-major -> (T, B, H) f32."""
    T, B, E = x_tbe.shape
    L = len(lstm_params)
    hidden = lstm_params[0][1].shape[1]                # w_hh: (4H, H)
    hp = _round_up(hidden, 128)

    # Batch padding; for B > 8 split into two blocks so v7x's 2 TCs share work.
    if B > 8:
        bp_total = _round_up(B, 16)
        bb = bp_total // 2
    else:
        bp_total = _round_up(B, 8)
        bb = bp_total
    # Time chunking: amortize grid overhead; chunk fully unrolled in-kernel.
    tc = T if T <= 32 else 32
    tp = _round_up(T, tc)

    # ---- Hoisted layer-0 input projection: one big batched matmul ----------
    w_ih0, _, b_ih0, b_hh0 = lstm_params[0]
    x_pad = jnp.zeros((tp, bp_total, E), jnp.float32).at[:T, :B, :].set(x_tbe)
    w0t = _prep_in_weight(w_ih0, hidden, hp)                     # (E, 4Hp)
    b0 = _prep_gate_bias(b_ih0 + b_hh0, hidden, hp)              # (4Hp,)
    xg = matmul_bias(x_pad.reshape(tp * bp_total, E), w0t, b0)   # (tp*bp, 4Hp)
    xg = xg.reshape(tp, bp_total, 4 * hp)

    # ---- Stacked, padded weights (resident in VMEM for the whole kernel) ---
    whh_all = jnp.stack([_prep_rec_weight(p[1], hidden, hp) for p in lstm_params])
    lr = max(L - 1, 1)
    if L > 1:
        wih_rest = jnp.stack([_prep_rec_weight(p[0], hidden, hp)
                              for p in lstm_params[1:]])
        b_rest = jnp.stack([_prep_gate_bias(p[2] + p[3], hidden, hp)
                            .reshape(1, 4 * hp) for p in lstm_params[1:]])
    else:  # unused dummies so the signature stays fixed
        wih_rest = jnp.zeros((1, hp, 4 * hp), jnp.bfloat16)
        b_rest = jnp.zeros((1, 1, 4 * hp), jnp.float32)

    kern = functools.partial(_fused_lstm_kernel,
                             num_layers=L, hp=hp, t_chunk=tc)
    h_out = pl.pallas_call(
        kern,
        out_shape=jax.ShapeDtypeStruct((tp, bp_total, hp), jnp.float32),
        grid_spec=pltpu.PrefetchScalarGridSpec(
            num_scalar_prefetch=0,
            grid=(bp_total // bb, tp // tc),
            in_specs=[
                pl.BlockSpec((tc, bb, 4 * hp), lambda b, t: (t, b, 0)),
                pl.BlockSpec((lr, hp, 4 * hp), lambda b, t: (0, 0, 0)),
                pl.BlockSpec((L, hp, 4 * hp), lambda b, t: (0, 0, 0)),
                pl.BlockSpec((lr, 1, 4 * hp), lambda b, t: (0, 0, 0)),
            ],
            out_specs=pl.BlockSpec((tc, bb, hp), lambda b, t: (t, b, 0)),
            scratch_shapes=[
                pltpu.VMEM((L, bb, hp), jnp.float32),   # h state (per layer)
                pltpu.VMEM((L, bb, hp), jnp.float32),   # c state (per layer)
            ],
        ),
        compiler_params=pltpu.CompilerParams(
            dimension_semantics=("parallel", "arbitrary"),
            vmem_limit_bytes=_VMEM_LIMIT),
    )(xg, wih_rest, whh_all, b_rest)
    return h_out[:T, :B, :hidden]


# ----------------------------------------------------------------------------
# DecoderRNN forward (PyTorch-equivalent semantics).
# ----------------------------------------------------------------------------
def decoder_forward(params, feature_maps, input_captions):
    """feature_maps: (B, E) f32, input_captions: (B, L) int32 -> (B, L, V)."""
    emb = jnp.take(params["embed"], input_captions, axis=0)          # (B, L, E)
    x = jnp.concatenate([feature_maps[:, None, :], emb], axis=1)     # (B, T, E)
    x = jnp.transpose(x, (1, 0, 2))                                  # (T, B, E)
    h = decoder_lstm(x, params["lstm"])                              # (T, B, H)
    T, B, H = h.shape
    logits = matmul_bias(h.reshape(T * B, H),
                         jnp.transpose(params["lin_w"]), params["lin_b"])
    out = logits.reshape(T, B, -1).transpose(1, 0, 2)                # (B, T, V)
    return out[:, 1:, :]                                             # drop t=0


# ----------------------------------------------------------------------------
# Pure-JAX f32 reference (lax.scan) for correctness check.
# ----------------------------------------------------------------------------
def _lstm_layer_ref(x_tbe, w_ih, w_hh, b_ih, b_hh):
    hidden = w_hh.shape[1]
    B = x_tbe.shape[1]

    def step(carry, xt):
        h, c = carry
        gates = xt @ w_ih.T + h @ w_hh.T + b_ih + b_hh
        i = jax.nn.sigmoid(gates[:, :hidden])
        f = jax.nn.sigmoid(gates[:, hidden:2 * hidden])
        g = jnp.tanh(gates[:, 2 * hidden:3 * hidden])
        o = jax.nn.sigmoid(gates[:, 3 * hidden:4 * hidden])
        c = f * c + i * g
        h = o * jnp.tanh(c)
        return (h, c), h

    init = (jnp.zeros((B, hidden), jnp.float32),
            jnp.zeros((B, hidden), jnp.float32))
    _, hs = jax.lax.scan(step, init, x_tbe)
    return hs


def decoder_forward_ref(params, feature_maps, input_captions):
    emb = jnp.take(params["embed"], input_captions, axis=0)
    x = jnp.concatenate([feature_maps[:, None, :], emb], axis=1)
    x = jnp.transpose(x, (1, 0, 2))
    for (w_ih, w_hh, b_ih, b_hh) in params["lstm"]:
        x = _lstm_layer_ref(x, w_ih, w_hh, b_ih, b_hh)
    out = x @ params["lin_w"].T + params["lin_b"]
    out = jnp.transpose(out, (1, 0, 2))
    return out[:, 1:, :]


# ----------------------------------------------------------------------------
# Deterministic parameter init + demo run.
# ----------------------------------------------------------------------------
def init_params(key, embed_size, hidden_size, vocab_size, num_layers):
    keys = jax.random.split(key, 3 + 4 * num_layers)
    params = {
        "embed": 0.1 * jax.random.normal(keys[0], (vocab_size, embed_size),
                                         jnp.float32),
        "lin_w": 0.1 * jax.random.normal(keys[1], (vocab_size, hidden_size),
                                         jnp.float32),
        "lin_b": 0.1 * jax.random.normal(keys[2], (vocab_size,), jnp.float32),
        "lstm": [],
    }
    for l in range(num_layers):
        e_in = embed_size if l == 0 else hidden_size
        k = keys[3 + 4 * l: 3 + 4 * (l + 1)]
        params["lstm"].append((
            0.1 * jax.random.normal(k[0], (4 * hidden_size, e_in), jnp.float32),
            0.1 * jax.random.normal(k[1], (4 * hidden_size, hidden_size),
                                    jnp.float32),
            0.1 * jax.random.normal(k[2], (4 * hidden_size,), jnp.float32),
            0.1 * jax.random.normal(k[3], (4 * hidden_size,), jnp.float32),
        ))
    return params


if __name__ == "__main__":
    EMBED, HIDDEN, VOCAB, NUM_LAYERS = 32, 32, 64, 2
    B, L = 2, 8                                      # caption length L -> T = L+1

    key = jax.random.PRNGKey(0)
    k_param, k_feat, k_cap = jax.random.split(key, 3)
    params = init_params(k_param, EMBED, HIDDEN, VOCAB, NUM_LAYERS)

    feature_maps = jax.random.normal(k_feat, (B, EMBED), jnp.float32)
    input_captions = jax.random.randint(k_cap, (B, L), 0, VOCAB, jnp.int32)

    out = decoder_forward(params, feature_maps, input_captions)
    out = jax.block_until_ready(out)
    assert out.shape == (B, L, VOCAB), out.shape

    ref = jax.block_until_ready(
        decoder_forward_ref(params, feature_maps, input_captions))
    # bf16 MXU operands (f32 accumulation) -> looser tolerance than pure f32.
    np.testing.assert_allclose(np.asarray(out), np.asarray(ref),
                               rtol=3e-2, atol=3e-2)

    print("KERNEL_OK")
</pallas_src>

<mosaic_0001>
module attributes {stable_mosaic.version = 11 : i64} {
  func.func @_matmul_bias_kernel(%arg0: i32, %arg1: i32, %arg2: i32, %arg3: memref<72x128xbf16, #tpu.memory_space<vmem>>, %arg4: memref<128x256xbf16, #tpu.memory_space<vmem>>, %arg5: memref<1x256xf32, #tpu.memory_space<vmem>>, %arg6: memref<72x256xf32, #tpu.memory_space<vmem>>, %arg7: memref<72x256xf32, #tpu.memory_space<vmem>>) attributes {dimension_semantics = [#tpu.dimension_semantics<parallel>, #tpu.dimension_semantics<parallel>, #tpu.dimension_semantics<arbitrary>], iteration_bounds = array<i64: 1, 2, 1>, scalar_prefetch = 0 : i64, scratch_operands = 1 : i64, tpu.core_type = #tpu.core_type<tc>, window_params = [{transform_indices = @transform_0, window_bounds = array<i64: 72, 128>}, {transform_indices = @transform_1, window_bounds = array<i64: 128, 256>}, {transform_indices = @transform_2, window_bounds = array<i64: 1, 256>}, {transform_indices = @transform_3, window_bounds = array<i64: 72, 256>}]} {
    %c0_i32 = arith.constant 0 : i32
    %0 = arith.cmpi eq, %arg2, %c0_i32 : i32
    %1 = arith.extui %0 : i1 to i32
    %c0_i32_0 = arith.constant 0 : i32
    %2 = arith.cmpi ne, %1, %c0_i32_0 : i32
    scf.if %2 {
      %cst_10 = arith.constant 0.000000e+00 : f32
      %12 = vector.broadcast %cst_10 : f32 to vector<72x256xf32>
      %c0_11 = arith.constant 0 : index
      %c0_12 = arith.constant 0 : index
      %13 = vector.load %arg7[%c0_11, %c0_12] : memref<72x256xf32, #tpu.memory_space<vmem>>, vector<72x256xf32>
      tpu.vector_store %arg7[%c0_11, %c0_12], %12 {strides = array<i32>} : memref<72x256xf32, #tpu.memory_space<vmem>>, vector<72x256xf32>,
    } else {
    }
    %c0 = arith.constant 0 : index
    %c0_1 = arith.constant 0 : index
    %3 = vector.load %arg7[%c0, %c0_1] : memref<72x256xf32, #tpu.memory_space<vmem>>, vector<72x256xf32>
    %c0_2 = arith.constant 0 : index
    %c0_3 = arith.constant 0 : index
    %4 = vector.load %arg3[%c0_2, %c0_3] : memref<72x128xbf16, #tpu.memory_space<vmem>>, vector<72x128xbf16>
    %c0_4 = arith.constant 0 : index
    %c0_5 = arith.constant 0 : index
    %5 = vector.load %arg4[%c0_4, %c0_5] : memref<128x256xbf16, #tpu.memory_space<vmem>>, vector<128x256xbf16>
    %cst = arith.constant dense<0.000000e+00> : vector<72x256xf32>
    %6 = tpu.matmul %4, %5, %cst {dimension_numbers = #tpu.dot_dimension_numbers<[1], [0], [0], [1], [0, 0, 1, 1], [], []>} : vector<72x128xbf16>, vector<128x256xbf16>, vector<72x256xf32> -> vector<72x256xf32>
    %7 = arith.addf %3, %6 : vector<72x256xf32>
    %c0_6 = arith.constant 0 : index
    %c0_7 = arith.constant 0 : index
    %8 = vector.load %arg7[%c0_6, %c0_7] : memref<72x256xf32, #tpu.memory_space<vmem>>, vector<72x256xf32>
    tpu.vector_store %arg7[%c0_6, %c0_7], %7 {strides = array<i32>} : memref<72x256xf32, #tpu.memory_space<vmem>>, vector<72x256xf32>,
    %c0_i32_8 = arith.constant 0 : i32
    %9 = arith.cmpi eq, %arg2, %c0_i32_8 : i32
    %10 = arith.extui %9 : i1 to i32
    %c0_i32_9 = arith.constant 0 : i32
    %11 = arith.cmpi ne, %10, %c0_i32_9 : i32
    scf.if %11 {
      %c0_10 = arith.constant 0 : index
      %c0_11 = arith.constant 0 : index
      %12 = vector.load %arg7[%c0_10, %c0_11] : memref<72x256xf32, #tpu.memory_space<vmem>>, vector<72x256xf32>
      %c0_12 = arith.constant 0 : index
      %c0_13 = arith.constant 0 : index
      %13 = vector.load %arg5[%c0_12, %c0_13] : memref<1x256xf32, #tpu.memory_space<vmem>>, vector<1x256xf32>
      %14 = vector.broadcast %13 : vector<1x256xf32> to vector<72x256xf32>
      %15 = arith.addf %12, %14 : vector<72x256xf32>
      %c0_14 = arith.constant 0 : index
      %c0_15 = arith.constant 0 : index
      %16 = vector.load %arg6[%c0_14, %c0_15] : memref<72x256xf32, #tpu.memory_space<vmem>>, vector<72x256xf32>
      tpu.vector_store %arg6[%c0_14, %c0_15], %15 {strides = array<i32>} : memref<72x256xf32, #tpu.memory_space<vmem>>, vector<72x256xf32>,
    } else {
    }
    return
  }
  func.func @transform_0(%arg0: i32, %arg1: i32, %arg2: i32) -> (i32, i32) {
    %c0_i32 = arith.constant 0 : i32
    return %arg0, %arg2 : i32, i32
  }
  func.func @transform_1(%arg0: i32, %arg1: i32, %arg2: i32) -> (i32, i32) {
    %c0_i32 = arith.constant 0 : i32
    return %arg2, %arg1 : i32, i32
  }
  func.func @transform_2(%arg0: i32, %arg1: i32, %arg2: i32) -> (i32, i32) {
    %c0_i32 = arith.constant 0 : i32
    %c0_i32_0 = arith.constant 0 : i32
    return %c0_i32, %arg1 : i32, i32
  }
  func.func @transform_3(%arg0: i32, %arg1: i32, %arg2: i32) -> (i32, i32) {
    %c0_i32 = arith.constant 0 : i32
    return %arg0, %arg1 : i32, i32
  }
}

</mosaic_0001>

<llo_original>
// kernel: tpu_custom_call.1
$region0: #{tpu_custom_call.1}
  #allocation0 [shape = 'u32[]', space=smem, size = 0x4, offset = 0x4, fixed_abs, tag = 'smem constant byte address 0x4 - core index']
  #allocation1 [shape = 'u32[144,128]{1,0:T(1,128)}', space=vmem, size = 0x12000, scoped, tag = 'internal scratch']
  #allocation2 [shape = 'f32[72,256]{1,0:T(8,128)}', space=vmem, size = 0x12000, scoped, tag = 'scratch operand']
  %s0 = inlined_call_operand.hbm [shape: bf16[72,128], index: 0, kind: input, shape index: {}]
  %s1 = inlined_call_operand.hbm [shape: bf16[128,512], index: 1, kind: input, shape index: {}]
  %s2 = inlined_call_operand.vmem [shape: f32[1,512], index: 2, kind: input, shape index: {}]
  %s3 = inlined_call_operand.hbm [shape: f32[72,512], index: 3, kind: output, shape index: {}]
  %s4 = sld [smem:[#allocation0]]
  $region61: #{tpu_custom_call.1} parent=0
    _
  %s6 = ssub.s32 1, %s4
  %s7 = scalar_select 0, %s6, %s4
  $region1: #{tpu_custom_call.1} parent=0
    #allocation3 [shape = 'u8[18432]{0}', space=vmem, size = 0x4800, scoped, tag = 'input window, operand 0, single buffered']
    #allocation4 [shape = 's32[2]{0}', space=sflag, size = 0x8, scoped, tag = 'scoped memory for tpu_custom_call.1']
    #allocation5 [shape = 's32[2]{0}', space=sflag, size = 0x8, scoped, tag = 'scoped memory for tpu_custom_call.1']
    #allocation6 [shape = 'u8[131072]{0}', space=vmem, size = 0x20000, scoped, tag = 'input window, operand 1']
    #allocation7 [shape = 's32[2]{0}', space=sflag, size = 0x8, scoped, tag = 'scoped memory for tpu_custom_call.1']
    #allocation8 [shape = 'u8[147456]{0}', space=vmem, size = 0x24000, scoped, tag = 'output window, operand 0']
    %8 = vsyncpa [#allocation4], 0
    %9 = vsyncpa [#allocation7], 0
    %s10 = scalar_lea.sflag [#allocation7], 1
    %11 = vsyncpa %s10, 0
    %12 = vsyncpa [#allocation5], 0
    %s13 = scalar_lea.sflag [#allocation5], 1
    %14 = vsyncpa %s13, 0
    loop: start=0, step=1, limit=4
    $region2: #{tpu_custom_call.1} parent=1 // loop_pre_header
      _
    $region3: #{tpu_custom_call.1} parent=1 // loop_header
      %s16 = sphi 0, %s20
      %p17 = scmp.ge.s32.totalorder %s16, 4
      %s23 = sphi 0, %s42
      %s24 = sphi 0, %s38
      %s25 = sphi 0, %s34
      %s26 = sphi 0, %s23
      %s27 = sphi 0, %s24
      %s28 = sphi 0, %s25
      %s29 = sphi 0, %s26
      %s30 = sphi 0, %s27
      %s31 = sphi 0, %s28
      %s47 = sphi 0, %s49
      %s50 = sphi 0, %s47
      %s51 = sphi 0, %s50
      %s67 = sphi 0, %s51
      %s75 = sphi 0, %s77
      %s78 = sphi 0, %s75
      %s79 = sphi 0, %s78
      %s95 = sphi 0, %s79
      %s101 = sphi 0, %s103
      %s104 = sphi 0, %s101
      %s105 = sphi 0, %s104
      %s121 = sphi 0, %s105
      %s129 = sphi 0, %s131
      %s132 = sphi 0, %s129
      %s133 = sphi 0, %s132
      %s149 = sphi 0, %s133
    $region4: #{tpu_custom_call.1} parent=1 // loop_header_branch
      %19 = sbr.rel (%p17) target = $region8
    $region5: #{tpu_custom_call.1} parent=1 // loop_body
      %s21 = ssub.s32 %s16, 1
      %s22 = ssub.s32 %s16, 2
      %s32 = sadd.s32 1, %s25
      %p33 = scmp.ge.s32.totalorder %s32, 1
      %s34 = scalar_select %p33, 0, %s32
      %s35 = sadd.s32 1, %s24
      %s36 = scalar_select %p33, %s35, %s24
      %p37 = scmp.ge.s32.totalorder %s36, 2
      %s38 = scalar_select %p37, 0, %s36
      %s39 = sadd.s32 1, %s23
      %s40 = scalar_select %p37, %s39, %s23
      %p41 = scmp.ge.s32.totalorder %s40, 1
      %s42 = scalar_select %p41, 0, %s40
      %s43 = ssub.s32 %s23, %s42
      %s44 = ssub.s32 %s25, %s34
      %s45 = sor.u32 %s43, %s44
      %p46 = scmp.eq.s32.totalorder %s45, 0
      %s48 = sadd.s32 %s47, 1
      %s49 = scalar_select %p46, %s47, %s48
      %p52 = pneg %p46
      %p53 = scmp.eq.s32.totalorder %s16, 1
      %p54 = por %p52, %p53
      %p55 = scmp.ne.s32.totalorder %s47, %s50
      %p56 = scmp.eq.s32.totalorder %s16, 0
      %p57 = por %p55, %p56
      %p58 = scmp.ne.s32.totalorder %s47, %s50
      %p59 = scmp.eq.s32.totalorder %s21, 1
      %p60 = por %p58, %p59
      %p61 = scmp.ne.s32.totalorder %s50, %s51
      %p62 = scmp.eq.s32.totalorder %s21, 0
      %p63 = por %p61, %p62
      %p64 = scmp.ne.s32.totalorder %s50, %s51
      %p65 = scmp.eq.s32.totalorder %s22, 1
      %p66 = por %p64, %p65
      %p68 = scmp.ne.s32.totalorder %s51, %s67
      %p69 = scmp.eq.s32.totalorder %s22, 0
      %p70 = por %p68, %p69
      %s71 = ssub.s32 %s25, %s34
      %s72 = ssub.s32 %s24, %s38
      %s73 = sor.u32 %s71, %s72
      %p74 = scmp.eq.s32.totalorder %s73, 0
      %s76 = sadd.s32 %s75, 1
      %s77 = scalar_select %p74, %s75, %s76
      %p80 = pneg %p74
      %p81 = scmp.eq.s32.totalorder %s16, 1
      %p82 = por %p80, %p81
      %p83 = scmp.ne.s32.totalorder %s75, %s78
      %p84 = scmp.eq.s32.totalorder %s16, 0
      %p85 = por %p83, %p84
      %p86 = scmp.ne.s32.totalorder %s75, %s78
      %p87 = scmp.eq.s32.totalorder %s21, 1
      %p88 = por %p86, %p87
      %p89 = scmp.ne.s32.totalorder %s78, %s79
      %p90 = scmp.eq.s32.totalorder %s21, 0
      %p91 = por %p89, %p90
      %p92 = scmp.ne.s32.totalorder %s78, %s79
      %p93 = scmp.eq.s32.totalorder %s22, 1
      %p94 = por %p92, %p93
      %p96 = scmp.ne.s32.totalorder %s79, %s95
      %p97 = scmp.eq.s32.totalorder %s22, 0
      %p98 = por %p96, %p97
      %s99 = ssub.s32 %s24, %s38
      %p100 = scmp.eq.s32.totalorder %s99, 0
      %s102 = sadd.s32 %s101, 1
      %s103 = scalar_select %p100, %s101, %s102
      %p106 = pneg %p100
      %p107 = scmp.eq.s32.totalorder %s16, 1
      %p108 = por %p106, %p107
      %p109 = scmp.ne.s32.totalorder %s101, %s104
      %p110 = scmp.eq.s32.totalorder %s16, 0
      %p111 = por %p109, %p110
      %p112 = scmp.ne.s32.totalorder %s101, %s104
      %p113 = scmp.eq.s32.totalorder %s21, 1
      %p114 = por %p112, %p113
      %p115 = scmp.ne.s32.totalorder %s104, %s105
      %p116 = scmp.eq.s32.totalorder %s21, 0
      %p117 = por %p115, %p116
      %p118 = scmp.ne.s32.totalorder %s104, %s105
      %p119 = scmp.eq.s32.totalorder %s22, 1
      %p120 = por %p118, %p119
      %p122 = scmp.ne.s32.totalorder %s105, %s121
      %p123 = scmp.eq.s32.totalorder %s22, 0
      %p124 = por %p122, %p123
      %s125 = ssub.s32 %s23, %s42
      %s126 = ssub.s32 %s24, %s38
      %s127 = sor.u32 %s125, %s126
      %p128 = scmp.eq.s32.totalorder %s127, 0
      %s130 = sadd.s32 %s129, 1
      %s131 = scalar_select %p128, %s129, %s130
      %p134 = pneg %p128
      %p135 = scmp.eq.s32.totalorder %s16, 1
      %p136 = por %p134, %p135
      %p137 = scmp.ne.s32.totalorder %s129, %s132
      %p138 = scmp.eq.s32.totalorder %s16, 0
      %p139 = por %p137, %p138
      %p140 = scmp.ne.s32.totalorder %s129, %s132
      %p141 = scmp.eq.s32.totalorder %s21, 1
      %p142 = por %p140, %p141
      %p143 = scmp.ne.s32.totalorder %s132, %s133
      %p144 = scmp.eq.s32.totalorder %s21, 0
      %p145 = por %p143, %p144
      %p146 = scmp.ne.s32.totalorder %s132, %s133
      %p147 = scmp.eq.s32.totalorder %s22, 1
      %p148 = por %p146, %p147
      %p150 = scmp.ne.s32.totalorder %s133, %s149
      %p151 = scmp.eq.s32.totalorder %s22, 0
      %p152 = por %p150, %p151
      %p153 = scmp.le.s32.totalorder 1, %s16
      %p154 = scmp.lt.s32.totalorder %s16, 3
      %p155 = pnand %p153, %p154
      %p156 = pneg %p155
      // Predicated region
      $region9: #{tpu_custom_call.1} parent=5 // pred_check
        _
      $region10: #{tpu_custom_call.1} parent=5 // pred_check_branch
        %158 = sbr.rel (%p155) target = $region12
      $region11: #{tpu_custom_call.1} parent=5 // pred_region
        %s159 = ssub.s32 %s16, 1
        // Predicated region
        $region13: #{tpu_custom_call.1} parent=11 // pred_check
          %p160 = pneg %p63
        $region14: #{tpu_custom_call.1} parent=11 // pred_check_branch
          %162 = sbr.rel (%p160) target = $region16
        $region15: #{tpu_custom_call.1} parent=11 // pred_region
          %s163 = smul.u32 9, %s26
          %s165 = ssub.s32 576, 576
          %166 = vsyncadd [#allocation4], %s165
          %s167 = sadd.s32 %s28, %s163
          %s168 = smul.addr %s167, 64
          %s169 = scalar_lea.hbm %s0, %s168
          %s170 = sshll.u32 [#allocation3], 4
          %s171 = int_to_ptr.vmem [resolvable:$true] %s170
          %176 = dma.hbm_to_vmem [thread:$0]  %s169, 576, %s171, [#allocation4], 64, 64, 4
        $region16: #{tpu_custom_call.1} parent=11 // pred_fallthru
          _
      $region12: #{tpu_custom_call.1} parent=5 // pred_fallthru
        _
      %p177 = scmp.lt.s32.totalorder %s16, 2
      // Predicated region
      $region17: #{tpu_custom_call.1} parent=5 // pred_check
        %p178 = pneg %p177
      $region18: #{tpu_custom_call.1} parent=5 // pred_check_branch
        %180 = sbr.rel (%p178) target = $region20
      $region19: #{tpu_custom_call.1} parent=5 // pred_region
        // Predicated region
        $region21: #{tpu_custom_call.1} parent=19 // pred_check
          %p181 = pneg %p85
        $region22: #{tpu_custom_call.1} parent=19 // pred_check_branch
          %183 = sbr.rel (%p181) target = $region24
        $region23: #{tpu_custom_call.1} parent=19 // pred_region
          %s184 = sand.u32 %s75, 1
          %s185 = scalar_lea.sflag [#allocation7], %s184
          %s186 = sand.u32 %s75, 1
          %s187 = smul.addr %s186, 128
          %s188 = scalar_lea.vmem [#allocation6], %s187
          %s189 = smul.u32 16, %s25
          %s190 = smul.u32 2, %s24
          %s192 = ssub.s32 2048, 2048
          %193 = vsyncadd %s185, %s192
          %s194 = smul.addr %s189, 4
          %s195 = sadd.s32 %s190, %s194
          %s196 = smul.addr %s195, 64
          %s197 = scalar_lea.hbm %s1, %s196
          %s198 = sshll.u32 %s188, 4
          %s199 = int_to_ptr.vmem [resolvable:$true] %s198
          %204 = dma.hbm_to_vmem [thread:$0]  %s197, 2048, %s199, %s185, 256, 128, 8
        $region24: #{tpu_custom_call.1} parent=19 // pred_fallthru
          _
        // Predicated region
        $region25: #{tpu_custom_call.1} parent=19 // pred_check
          %p205 = pneg %p111
        $region26: #{tpu_custom_call.1} parent=19 // pred_check_branch
          %207 = sbr.rel (%p205) target = $region28
        $region27: #{tpu_custom_call.1} parent=19 // pred_region
          %s208 = smul.u32 2, %s24
          %p209 = scmp.lt.s32.totalorder %s208, 3
          %s210 = scalar_select %p209, %s208, 3
          %s211 = scalar_lea.vmem %s2, %s210
          %s212 = smul.u32 2, %s24
        $region28: #{tpu_custom_call.1} parent=19 // pred_fallthru
          _
      $region20: #{tpu_custom_call.1} parent=5 // pred_fallthru
        _
      %p213 = scmp.le.s32.totalorder 1, %s16
      %p214 = scmp.lt.s32.totalorder %s16, 3
      %p215 = pnand %p213, %p214
      %p216 = pneg %p215
      // Predicated region
      $region29: #{tpu_custom_call.1} parent=5 // pred_check
        _
      $region30: #{tpu_custom_call.1} parent=5 // pred_check_branch
        %218 = sbr.rel (%p215) target = $region32
      $region31: #{tpu_custom_call.1} parent=5 // pred_region
        %s219 = ssub.s32 %s16, 1
        // Predicated region
        $region33: #{tpu_custom_call.1} parent=31 // pred_check
          %p220 = pneg %p63
        $region34: #{tpu_custom_call.1} parent=31 // pred_check_branch
          %222 = sbr.rel (%p220) target = $region36
        $region35: #{tpu_custom_call.1} parent=31 // pred_region
          %223 = dma.done [#allocation4], 576
        $region36: #{tpu_custom_call.1} parent=31 // pred_fallthru
          _
        %s224 = sand.u32 %s78, 1
        %s225 = scalar_lea.sflag [#allocation7], %s224
        %s226 = sand.u32 %s78, 1
        %s227 = smul.addr %s226, 128
        %s228 = scalar_lea.vmem [#allocation6], %s227
        // Predicated region
        $region37: #{tpu_custom_call.1} parent=31 // pred_check
          %p229 = pneg %p91
        $region38: #{tpu_custom_call.1} parent=31 // pred_check_branch
          %231 = sbr.rel (%p229) target = $region40
        $region39: #{tpu_custom_call.1} parent=31 // pred_region
          %232 = dma.done %s225, 2048
        $region40: #{tpu_custom_call.1} parent=31 // pred_fallthru
          _
        %p233 = pneg %p63
        %p234 = pneg %p60
        %s235 = sand.u32 %s78, 1
        %s236 = scalar_lea.sflag [#allocation7], %s235
        %s237 = sand.u32 %s78, 1
        %s238 = smul.addr %s237, 128
        %s239 = scalar_lea.vmem [#allocation6], %s238
        %p240 = pneg %p91
        %p241 = pneg %p88
        %s242 = smul.u32 2, %s27
        %p243 = scmp.lt.s32.totalorder %s242, 3
        %s244 = scalar_select %p243, %s242, 3
        %s245 = scalar_lea.vmem %s2, %s244
        %p246 = pneg %p117
        %p247 = pneg %p114
        %p248 = pneg %p145
        %p249 = pneg %p142
        %s250 = sand.u32 %s132, 1
        %s251 = scalar_lea.sflag [#allocation5], %s250
        %s252 = sand.u32 %s132, 1
        %s253 = smul.addr %s252, 144
        %s254 = scalar_lea.vmem [#allocation8], %s253
        %s255 = smul.u32 9, %s26
        %s256 = smul.u32 16, %s28
        %s257 = smul.u32 2, %s27
        %s258 = smul.u32 2, %s27
        %p259 = scmp.lt.s32.totalorder %s258, 3
        %s260 = scalar_select %p259, %s258, 3
        %s261 = scalar_lea.vmem %s2, %s260
        %s262 = smul.u32 2, %s27
        %s263 = smul.u32 9, %s26
        %s264 = smul.u32 2, %s27
        %p266 = scmp.eq.s32.totalorder %s28, 0
        // Predicated region
        $region41: #{tpu_custom_call.1} parent=31 // pred_check
          %p267 = pneg %p266
        $region42: #{tpu_custom_call.1} parent=31 // pred_check_branch
          %269 = sbr.rel (%p267) target = $region44
        $region43: #{tpu_custom_call.1} parent=31 // pred_region
          %270 = vst [vmem:[#allocation2] sm:$0xff] 0.0
          %271 = vst [vmem:[#allocation2 + $0x8] sm:$0xff] 0.0
          %272 = vst [vmem:[#allocation2 + $0x10] sm:$0xff] 0.0
          %273 = vst [vmem:[#allocation2 + $0x18] sm:$0xff] 0.0
          %274 = vst [vmem:[#allocation2 + $0x20] sm:$0xff] 0.0
          %275 = vst [vmem:[#allocation2 + $0x28] sm:$0xff] 0.0
          %276 = vst [vmem:[#allocation2 + $0x30] sm:$0xff] 0.0
          %277 = vst [vmem:[#allocation2 + $0x38] sm:$0xff] 0.0
          %278 = vst [vmem:[#allocation2 + $0x40] sm:$0xff] 0.0
          %279 = vst [vmem:[#allocation2 + $0x48] sm:$0xff] 0.0
          %280 = vst [vmem:[#allocation2 + $0x50] sm:$0xff] 0.0
          %281 = vst [vmem:[#allocation2 + $0x58] sm:$0xff] 0.0
          %282 = vst [vmem:[#allocation2 + $0x60] sm:$0xff] 0.0
          %283 = vst [vmem:[#allocation2 + $0x68] sm:$0xff] 0.0
          %284 = vst [vmem:[#allocation2 + $0x70] sm:$0xff] 0.0
          %285 = vst [vmem:[#allocation2 + $0x78] sm:$0xff] 0.0
          %286 = vst [vmem:[#allocation2 + $0x80] sm:$0xff] 0.0
          %287 = vst [vmem:[#allocation2 + $0x88] sm:$0xff] 0.0
        $region44: #{tpu_custom_call.1} parent=31 // pred_fallthru
          _
        %v288 = vld [vmem:[#allocation2] sm:$0xff]
        %v289 = vld [vmem:[#allocation2 + $0x8] sm:$0xff]
        %v290 = vld [vmem:[#allocation2 + $0x10] sm:$0xff]
        %v291 = vld [vmem:[#allocation2 + $0x18] sm:$0xff]
        %v292 = vld [vmem:[#allocation2 + $0x20] sm:$0xff]
        %v293 = vld [vmem:[#allocation2 + $0x28] sm:$0xff]
        %v294 = vld [vmem:[#allocation2 + $0x30] sm:$0xff]
        %v295 = vld [vmem:[#allocation2 + $0x38] sm:$0xff]
        %v296 = vld [vmem:[#allocation2 + $0x40] sm:$0xff]
        %v297 = vld [vmem:[#allocation2 + $0x48] sm:$0xff]
        %v298 = vld [vmem:[#allocation2 + $0x50] sm:$0xff]
        %v299 = vld [vmem:[#allocation2 + $0x58] sm:$0xff]
        %v300 = vld [vmem:[#allocation2 + $0x60] sm:$0xff]
        %v301 = vld [vmem:[#allocation2 + $0x68] sm:$0xff]
        %v302 = vld [vmem:[#allocation2 + $0x70] sm:$0xff]
        %v303 = vld [vmem:[#allocation2 + $0x78] sm:$0xff]
        %v304 = vld [vmem:[#allocation2 + $0x80] sm:$0xff]
        %v305 = vld [vmem:[#allocation2 + $0x88] sm:$0xff]
        %v306 = vld [vmem:[#allocation3] sm:$0xf]
        %v307 = vld [vmem:[#allocation3 + $0x4] sm:$0xf]
        %v308 = vld [vmem:[#allocation3 + $0x8] sm:$0xf]
        %v309 = vld [vmem:[#allocation3 + $0xc] sm:$0xf]
        %v310 = vld [vmem:[#allocation3 + $0x10] sm:$0xf]
        %v311 = vld [vmem:[#allocation3 + $0x14] sm:$0xf]
        %v312 = vld [vmem:[#allocation3 + $0x18] sm:$0xf]
        %v313 = vld [vmem:[#allocation3 + $0x1c] sm:$0xf]
        %v314 = vld [vmem:[#allocation3 + $0x20] sm:$0xf]
        %v315 = vld [vmem:[%s228] sm:$0xff]
        %v316 = vld [vmem:[%s228 + $0x8] sm:$0xff]
        %v317 = vld [vmem:[%s228 + $0x10] sm:$0xff]
        %v318 = vld [vmem:[%s228 + $0x18] sm:$0xff]
        %v319 = vld [vmem:[%s228 + $0x20] sm:$0xff]
        %v320 = vld [vmem:[%s228 + $0x28] sm:$0xff]
        %v321 = vld [vmem:[%s228 + $0x30] sm:$0xff]
        %v322 = vld [vmem:[%s228 + $0x38] sm:$0xff]
        %v323 = vld [vmem:[%s228 + $0x40] sm:$0xff]
        %v324 = vld [vmem:[%s228 + $0x48] sm:$0xff]
        %v325 = vld [vmem:[%s228 + $0x50] sm:$0xff]
        %v326 = vld [vmem:[%s228 + $0x58] sm:$0xff]
        %v327 = vld [vmem:[%s228 + $0x60] sm:$0xff]
        %v328 = vld [vmem:[%s228 + $0x68] sm:$0xff]
        %v329 = vld [vmem:[%s228 + $0x70] sm:$0xff]
        %v330 = vld [vmem:[%s228 + $0x78] sm:$0xff]
        %v340 = vunpack.c.l.b16 %v306
        %v341 = vunpack.c.l.b16 %v307
        %v342 = vunpack.c.l.b16 %v308
        %v343 = vunpack.c.l.b16 %v309
        %v344 = vunpack.c.l.b16 %v310
        %v345 = vunpack.c.l.b16 %v311
        %v346 = vunpack.c.l.b16 %v312
        %v347 = vunpack.c.l.b16 %v313
        %v348 = vunpack.c.l.b16 %v314
        %v349 = vpack.c.b16 %v341, %v340
        %v350 = vpack.c.b16 %v343, %v342
        %v351 = vpack.c.b16 %v345, %v344
        %v352 = vpack.c.b16 %v347, %v346
        %v353 = vpack.c.b16 %v348, %v348
        %v375 = vunpack.c.l.b16 %v315
        %v376 = vunpack.c.h.b16 %v315
        %v377 = vunpack.c.l.b16 %v316
        %v378 = vunpack.c.h.b16 %v316
        %v379 = vunpack.c.l.b16 %v317
        %v380 = vunpack.c.h.b16 %v317
        %v381 = vunpack.c.l.b16 %v318
        %v382 = vunpack.c.h.b16 %v318
        %v383 = vunpack.c.l.b16 %v319
        %v384 = vunpack.c.h.b16 %v319
        %v385 = vunpack.c.l.b16 %v320
        %v386 = vunpack.c.h.b16 %v320
        %v387 = vunpack.c.l.b16 %v321
        %v388 = vunpack.c.h.b16 %v321
        %v389 = vunpack.c.l.b16 %v322
        %v390 = vunpack.c.h.b16 %v322
        %v391 = vunpack.c.l.b16 %v323
        %v392 = vunpack.c.h.b16 %v323
        %v393 = vunpack.c.l.b16 %v324
        %v394 = vunpack.c.h.b16 %v324
        %v395 = vunpack.c.l.b16 %v325
        %v396 = vunpack.c.h.b16 %v325
        %v397 = vunpack.c.l.b16 %v326
        %v398 = vunpack.c.h.b16 %v326
        %v399 = vunpack.c.l.b16 %v327
        %v400 = vunpack.c.h.b16 %v327
        %v401 = vunpack.c.l.b16 %v328
        %v402 = vunpack.c.h.b16 %v328
        %v403 = vunpack.c.l.b16 %v329
        %v404 = vunpack.c.h.b16 %v329
        %v405 = vunpack.c.l.b16 %v330
        %v406 = vunpack.c.h.b16 %v330
        %v407 = vpack.c.b16 %v377, %v375
        %v408 = vpack.c.b16 %v378, %v376
        %v409 = vpack.c.b16 %v381, %v379
        %v410 = vpack.c.b16 %v382, %v380
        %v411 = vpack.c.b16 %v385, %v383
        %v412 = vpack.c.b16 %v386, %v384
        %v413 = vpack.c.b16 %v389, %v387
        %v414 = vpack.c.b16 %v390, %v388
        %v415 = vpack.c.b16 %v393, %v391
        %v416 = vpack.c.b16 %v394, %v392
        %v417 = vpack.c.b16 %v397, %v395
        %v418 = vpack.c.b16 %v398, %v396
        %v419 = vpack.c.b16 %v401, %v399
        %v420 = vpack.c.b16 %v402, %v400
        %v421 = vpack.c.b16 %v405, %v403
        %v422 = vpack.c.b16 %v406, %v404
        %439 = vmatprep.subr.bf16.mxu0 %v408
        %440 = vmatpush1.bf16.msra.mxu0 %v407
        %441 = vmatprep.subr.bf16.mxu0 %v410
        %442 = vmatpush1.bf16.msra.mxu0 %v409
        %443 = vmatprep.subr.bf16.mxu0 %v412
        %444 = vmatpush1.bf16.msra.mxu0 %v411
        %445 = vmatprep.subr.bf16.mxu0 %v414
        %446 = vmatpush1.bf16.msra.mxu0 %v413
        %447 = vmatprep.subr.bf16.mxu0 %v416
        %448 = vmatpush1.bf16.msra.mxu0 %v415
        %449 = vmatprep.subr.bf16.mxu0 %v418
        %450 = vmatpush1.bf16.msra.mxu0 %v417
        %451 = vmatprep.subr.bf16.mxu0 %v420
        %452 = vmatpush1.bf16.msra.mxu0 %v419
        %453 = vmatprep.subr.bf16.mxu0 %v422
        %454 = vmatpush1.bf16.msra.mxu0 %v421
        %455 = vmatprep.subr.bf16.mxu0 0
        %456 = vmatpush1.bf16.msra.mxu0 0
        %457 = vmatprep.subr.bf16.mxu0 0
        %458 = vmatpush1.bf16.msra.mxu0 0
        %459 = vmatprep.subr.bf16.mxu0 0
        %460 = vmatpush1.bf16.msra.mxu0 0
        %461 = vmatprep.subr.bf16.mxu0 0
        %462 = vmatpush1.bf16.msra.mxu0 0
        %463 = vmatprep.subr.bf16.mxu0 0
        %464 = vmatpush1.bf16.msra.mxu0 0
        %465 = vmatprep.subr.bf16.mxu0 0
        %466 = vmatpush1.bf16.msra.mxu0 0
        %467 = vmatprep.subr.bf16.mxu0 0
        %468 = vmatpush1.bf16.msra.mxu0 0
        %469 = vmatprep.subr.bf16.mxu0 0
        %470 = vmatpush1.bf16.msra.mxu0 0
        %471 = vmatprep.mubr.bf16.mxu0 0
        %472 = vmatmul.mubr.bf16.gmra.mrb[0].mxu0 %v349
        %v473 = vpop.f32.mrb[0].mxu0
        %v474 = vadd.f32 0.0, %v473
        %v475 = vpop.f32.mrb[0].mxu0
        %v476 = vadd.f32 0.0, %v475
        %v477 = vpop.f32.mrb[0].mxu0
        %v478 = vadd.f32 0.0, %v477
        %v479 = vpop.f32.mrb[0].mxu0
        %v480 = vadd.f32 0.0, %v479
        %481 = vmatprep.mubr.bf16.mxu0 0
        %482 = vmatmul.mubr.bf16.gmra.mrb[0].mxu0 %v350
        %v483 = vpop.f32.mrb[0].mxu0
        %v484 = vadd.f32 0.0, %v483
        %v485 = vpop.f32.mrb[0].mxu0
        %v486 = vadd.f32 0.0, %v485
        %v487 = vpop.f32.mrb[0].mxu0
        %v488 = vadd.f32 0.0, %v487
        %v489 = vpop.f32.mrb[0].mxu0
        %v490 = vadd.f32 0.0, %v489
        %491 = vmatprep.mubr.bf16.mxu0 0
        %492 = vmatmul.mubr.bf16.gmra.mrb[0].mxu0 %v351
        %v493 = vpop.f32.mrb[0].mxu0
        %v494 = vadd.f32 0.0, %v493
        %v495 = vpop.f32.mrb[0].mxu0
        %v496 = vadd.f32 0.0, %v495
        %v497 = vpop.f32.mrb[0].mxu0
        %v498 = vadd.f32 0.0, %v497
        %v499 = vpop.f32.mrb[0].mxu0
        %v500 = vadd.f32 0.0, %v499
        %501 = vmatprep.mubr.bf16.mxu0 0
        %502 = vmatmul.mubr.bf16.gmra.mrb[0].mxu0 %v352
        %v503 = vpop.f32.mrb[0].mxu0
        %v504 = vadd.f32 0.0, %v503
        %v505 = vpop.f32.mrb[0].mxu0
        %v506 = vadd.f32 0.0, %v505
        %v507 = vpop.f32.mrb[0].mxu0
        %v508 = vadd.f32 0.0, %v507
        %v509 = vpop.f32.mrb[0].mxu0
        %v510 = vadd.f32 0.0, %v509
        %511 = vmatprep.mubr.bf16.mxu0 0
        %512 = vmatmul.mubr.bf16.gmra.mrb[0].mxu0 %v353
        %v513 = vpop.f32.mrb[0].mxu0
        %v514 = vadd.f32 0.0, %v513
        %v515 = vpop.f32.mrb[0].mxu0
        %v516 = vadd.f32 0.0, %v515
        %v517 = vpop.f32.mrb[0].mxu0
        %v518 = vpop.f32.mrb[0].mxu0
        %519 = vdwg.mxu0
        %v520 = vadd.f32 %v288, %v474
        %v521 = vadd.f32 %v289, %v476
        %v522 = vadd.f32 %v290, %v478
        %v523 = vadd.f32 %v291, %v480
        %v524 = vadd.f32 %v292, %v484
        %v525 = vadd.f32 %v293, %v486
        %v526 = vadd.f32 %v294, %v488
        %v527 = vadd.f32 %v295, %v490
        %v528 = vadd.f32 %v296, %v494
        %v529 = vadd.f32 %v297, %v496
        %v530 = vadd.f32 %v298, %v498
        %v531 = vadd.f32 %v299, %v500
        %v532 = vadd.f32 %v300, %v504
        %v533 = vadd.f32 %v301, %v506
        %v534 = vadd.f32 %v302, %v508
        %v535 = vadd.f32 %v303, %v510
        %v536 = vadd.f32 %v304, %v514
        %v537 = vadd.f32 %v305, %v516
        %538 = vst [vmem:[#allocation2] sm:$0xff] %v520
        %539 = vst [vmem:[#allocation2 + $0x8] sm:$0xff] %v521
        %540 = vst [vmem:[#allocation2 + $0x10] sm:$0xff] %v522
        %541 = vst [vmem:[#allocation2 + $0x18] sm:$0xff] %v523
        %542 = vst [vmem:[#allocation2 + $0x20] sm:$0xff] %v524
        %543 = vst [vmem:[#allocation2 + $0x28] sm:$0xff] %v525
        %544 = vst [vmem:[#allocation2 + $0x30] sm:$0xff] %v526
        %545 = vst [vmem:[#allocation2 + $0x38] sm:$0xff] %v527
        %546 = vst [vmem:[#allocation2 + $0x40] sm:$0xff] %v528
        %547 = vst [vmem:[#allocation2 + $0x48] sm:$0xff] %v529
        %548 = vst [vmem:[#allocation2 + $0x50] sm:$0xff] %v530
        %549 = vst [vmem:[#allocation2 + $0x58] sm:$0xff] %v531
        %550 = vst [vmem:[#allocation2 + $0x60] sm:$0xff] %v532
        %551 = vst [vmem:[#allocation2 + $0x68] sm:$0xff] %v533
        %552 = vst [vmem:[#allocation2 + $0x70] sm:$0xff] %v534
        %553 = vst [vmem:[#allocation2 + $0x78] sm:$0xff] %v535
        %554 = vst [vmem:[#allocation2 + $0x80] sm:$0xff] %v536
        %555 = vst [vmem:[#allocation2 + $0x88] sm:$0xff] %v537
        // Predicated region
        $region45: #{tpu_custom_call.1} parent=31 // pred_check
          %p556 = pneg %p266
        $region46: #{tpu_custom_call.1} parent=31 // pred_check_branch
          %558 = sbr.rel (%p556) target = $region48
        $region47: #{tpu_custom_call.1} parent=31 // pred_region
          %v559 = vld [vmem:[#allocation2] sm:$0xff]
          %v560 = vld [vmem:[#allocation2 + $0x8] sm:$0xff]
          %v561 = vld [vmem:[#allocation2 + $0x10] sm:$0xff]
          %v562 = vld [vmem:[#allocation2 + $0x18] sm:$0xff]
          %v563 = vld [vmem:[#allocation2 + $0x20] sm:$0xff]
          %v564 = vld [vmem:[#allocation2 + $0x28] sm:$0xff]
          %v565 = vld [vmem:[#allocation2 + $0x30] sm:$0xff]
          %v566 = vld [vmem:[#allocation2 + $0x38] sm:$0xff]
          %v567 = vld [vmem:[#allocation2 + $0x40] sm:$0xff]
          %v568 = vld [vmem:[#allocation2 + $0x48] sm:$0xff]
          %v569 = vld [vmem:[#allocation2 + $0x50] sm:$0xff]
          %v570 = vld [vmem:[#allocation2 + $0x58] sm:$0xff]
          %v571 = vld [vmem:[#allocation2 + $0x60] sm:$0xff]
          %v572 = vld [vmem:[#allocation2 + $0x68] sm:$0xff]
          %v573 = vld [vmem:[#allocation2 + $0x70] sm:$0xff]
          %v574 = vld [vmem:[#allocation2 + $0x78] sm:$0xff]
          %v575 = vld [vmem:[#allocation2 + $0x80] sm:$0xff]
          %v576 = vld [vmem:[#allocation2 + $0x88] sm:$0xff]
          %v577 = vld [vmem:[%s261] sm:$0x3]
          %v579 = vlaneseq
          %v580 = vshrl.u32 %v579, 7
          %v581 = vsub.s32 0, %v580
          %v582 = vrot.slane %v577, %v581
          %v583 = vlaneseq
          %v584 = vshrl.u32 %v583, 7
          %v585 = vsub.s32 1, %v584
          %v586 = vrot.slane %v577, %v585
          %v589 = vadd.f32 %v559, %v582
          %v590 = vadd.f32 %v560, %v586
          %v591 = vadd.f32 %v561, %v582
          %v592 = vadd.f32 %v562, %v586
          %v593 = vadd.f32 %v563, %v582
          %v594 = vadd.f32 %v564, %v586
          %v595 = vadd.f32 %v565, %v582
          %v596 = vadd.f32 %v566, %v586
          %v597 = vadd.f32 %v567, %v582
          %v598 = vadd.f32 %v568, %v586
          %v599 = vadd.f32 %v569, %v582
          %v600 = vadd.f32 %v570, %v586
          %v601 = vadd.f32 %v571, %v582
          %v602 = vadd.f32 %v572, %v586
          %v603 = vadd.f32 %v573, %v582
          %v604 = vadd.f32 %v574, %v586
          %v605 = vadd.f32 %v575, %v582
          %v606 = vadd.f32 %v576, %v586
          %607 = vst [vmem:[%s254] sm:$0xff] %v589
          %608 = vst [vmem:[%s254 + $0x8] sm:$0xff] %v590
          %609 = vst [vmem:[%s254 + $0x10] sm:$0xff] %v591
          %610 = vst [vmem:[%s254 + $0x18] sm:$0xff] %v592
          %611 = vst [vmem:[%s254 + $0x20] sm:$0xff] %v593
          %612 = vst [vmem:[%s254 + $0x28] sm:$0xff] %v594
          %613 = vst [vmem:[%s254 + $0x30] sm:$0xff] %v595
          %614 = vst [vmem:[%s254 + $0x38] sm:$0xff] %v596
          %615 = vst [vmem:[%s254 + $0x40] sm:$0xff] %v597
          %616 = vst [vmem:[%s254 + $0x48] sm:$0xff] %v598
          %617 = vst [vmem:[%s254 + $0x50] sm:$0xff] %v599
          %618 = vst [vmem:[%s254 + $0x58] sm:$0xff] %v600
          %619 = vst [vmem:[%s254 + $0x60] sm:$0xff] %v601
          %620 = vst [vmem:[%s254 + $0x68] sm:$0xff] %v602
          %621 = vst [vmem:[%s254 + $0x70] sm:$0xff] %v603
          %622 = vst [vmem:[%s254 + $0x78] sm:$0xff] %v604
          %623 = vst [vmem:[%s254 + $0x80] sm:$0xff] %v605
          %624 = vst [vmem:[%s254 + $0x88] sm:$0xff] %v606
        $region48: #{tpu_custom_call.1} parent=31 // pred_fallthru
          _
        %s625 = sand.u32 %s132, 1
        %s626 = scalar_lea.sflag [#allocation5], %s625
        %s627 = sand.u32 %s132, 1
        %s628 = smul.addr %s627, 144
        %s629 = scalar_lea.vmem [#allocation8], %s628
        // Predicated region
        $region49: #{tpu_custom_call.1} parent=31 // pred_check
          %p630 = pneg %p142
        $region50: #{tpu_custom_call.1} parent=31 // pred_check_branch
          %632 = sbr.rel (%p630) target = $region52
        $region51: #{tpu_custom_call.1} parent=31 // pred_region
          %s633 = smul.u32 9, %s26
          %s634 = smul.u32 2, %s27
          %s636 = ssub.s32 2304, 2304
          %637 = vsyncadd %s626, %s636
          %s638 = smul.addr %s633, 4
          %s639 = sadd.s32 %s634, %s638
          %s640 = smul.addr %s639, 128
          %s641 = scalar_lea.hbm %s3, %s640
          %s642 = sshll.u32 %s629, 4
          %s643 = int_to_ptr.vmem [resolvable:$true] %s642
          %648 = dma.vmem_to_hbm [thread:$0]  %s643, 2304, %s641, %s626, 256, 512, 16
        $region52: #{tpu_custom_call.1} parent=31 // pred_fallthru
          _
      $region32: #{tpu_custom_call.1} parent=5 // pred_fallthru
        _
      %p649 = scmp.le.s32.totalorder 2, %s16
      // Predicated region
      $region53: #{tpu_custom_call.1} parent=5 // pred_check
        %p650 = pneg %p649
      $region54: #{tpu_custom_call.1} parent=5 // pred_check_branch
        %652 = sbr.rel (%p650) target = $region56
      $region55: #{tpu_custom_call.1} parent=5 // pred_region
        %s653 = ssub.s32 %s16, 2
        // Predicated region
        $region57: #{tpu_custom_call.1} parent=55 // pred_check
          %p654 = pneg %p148
        $region58: #{tpu_custom_call.1} parent=55 // pred_check_branch
          %656 = sbr.rel (%p654) target = $region60
        $region59: #{tpu_custom_call.1} parent=55 // pred_region
          %s657 = sand.u32 %s133, 1
          %s658 = scalar_lea.sflag [#allocation5], %s657
          %s659 = sand.u32 %s133, 1
          %s660 = smul.addr %s659, 144
          %s661 = scalar_lea.vmem [#allocation8], %s660
          %662 = dma.done %s658, 2304
        $region60: #{tpu_custom_call.1} parent=55 // pred_fallthru
          _
      $region56: #{tpu_custom_call.1} parent=5 // pred_fallthru
        _
    $region6: #{tpu_custom_call.1} parent=1 // loop_footer
      %s20 = sadd.s32 1, %s16
    $region7: #{tpu_custom_call.1} parent=1 // loop_footer_branch
      %15 = sbr.rel target = $region3
    $region8: #{tpu_custom_call.1} parent=1 // loop_exit
      _
    %663 = vsyncpa [#allocation4], 1
    %s664 = scalar_lea.sflag [#allocation4], 1
    %665 = vsyncpa %s664, 1
    %666 = vsyncpa [#allocation7], 1
    %s667 = scalar_lea.sflag [#allocation7], 1
    %668 = vsyncpa %s667, 1
    %669 = vsyncpa [#allocation5], 1
    %s670 = scalar_lea.sflag [#allocation5], 1
    %671 = vsyncpa %s670, 1

</llo_original>
